<compile_context>
chip_gen: v5e
topology: v5e:2x2
jax: 0.10.0
libtpu: 0.0.40
codegen_flags: <defaults>
</compile_context>

<pallas_src>
import jax
import jax.numpy as jnp
from jax.experimental import pallas as pl
from jax.experimental.pallas import tpu as pltpu

# --- module hyperparameters (from the PyTorch source) ---
N_EMBED = 32
HEAD_SIZE = 8          # head_size passed to Head(head_size)
BLOCK_SIZE = 128       # size of the registered tril buffer (only [:T,:T] is used)


def _head_kernel(x_ref, wqkv_ref, o_ref):
    # x_ref:    (bt, T, C)   bf16 tile of batch elements
    # wqkv_ref: (C, 3*hs)    packed [Wq*scale | Wk | Wv], (in, out) layout, bf16 (resident)
    # o_ref:    (bt, T*hs)   lane-dense output slab
    bt, t, c = x_ref.shape
    hs = wqkv_ref.shape[1] // 3

    # Fused q/k/v projection: one (bt*T, C) @ (C, 3*hs) matmul, f32 accumulation.
    x2d = x_ref[...].reshape(bt * t, c)                       # already bf16
    qkv = jnp.dot(x2d, wqkv_ref[...],
                  preferred_element_type=jnp.float32)         # (bt*T, 3*hs) f32
    qkv = qkv.reshape(bt, t, 3 * hs)
    q = qkv[:, :, 0 * hs:1 * hs]                              # scale already folded into Wq
    k = qkv[:, :, 1 * hs:2 * hs]
    v = qkv[:, :, 2 * hs:3 * hs]

    # Attention scores, batched over the tile; causal mask folded into one select.
    wei = jnp.einsum('btd,bsd->bts',
                     q.astype(jnp.bfloat16), k.astype(jnp.bfloat16),
                     preferred_element_type=jnp.float32)      # (bt, T, T) f32
    row = jax.lax.broadcasted_iota(jnp.int32, (t, t), 0)
    col = jax.lax.broadcasted_iota(jnp.int32, (t, t), 1)
    wei = jnp.where((col <= row)[None, :, :], wei, -jnp.inf)

    # Softmax in f32 (exp on EUP, approx reciprocal for the denominator).
    # Safe with -inf: every causal row contains its (unmasked) diagonal.
    m = jnp.max(wei, axis=-1, keepdims=True)
    e = jnp.exp(wei - m)
    denom = jnp.sum(e, axis=-1, keepdims=True)
    p = e * pl.reciprocal(denom, approx=True)

    y = jnp.einsum('bts,bsd->btd',
                   p.astype(jnp.bfloat16), v.astype(jnp.bfloat16),
                   preferred_element_type=jnp.float32)        # (bt, T, hs) f32

    # Lane-dense store: whole tile as one (bt, T*hs) slab.
    o_ref[...] = y.reshape(bt, t * hs).astype(o_ref.dtype)


def head_attention(x, wq, wk, wv, *, batch_tile=32):
    """x: (B, T, C); wq/wk/wv: (C, hs) stored (in, out) so x @ W == PyTorch x @ W.T."""
    B, T, C = x.shape
    hs = wq.shape[1]
    assert wq.shape == (C, hs) and wk.shape == (C, hs) and wv.shape == (C, hs)
    assert T <= BLOCK_SIZE

    # Tile the batch: big tiles to amortize per-step overhead.  If B is large
    # enough, make sure there are at least 2 grid steps so v7x's second
    # TensorCore is not idle (keep bt >= 8 so tiles stay sublane-aligned).
    bt = min(batch_tile, B)
    if pl.cdiv(B, bt) < 2 and B >= 16:
        bt = max(8, pl.cdiv(B, 2))
    grid = (pl.cdiv(B, bt),)
    # TODO(synk): ragged last tile (B % bt != 0) runs softmax on padded garbage
    # rows; Pallas masks the writeback so results are correct, but pad B if NaN
    # traps / debug checks are ever enabled.

    # Fold the 1/sqrt(C)=1/sqrt(n_embed) scale into Wq (matches the PyTorch `/ C**0.5`),
    # pack the three projections into one wide weight, bf16 for the MXU.
    scale = 1.0 / (C ** 0.5)
    wqkv = jnp.concatenate([wq * scale, wk, wv], axis=1).astype(jnp.bfloat16)  # (C, 3*hs)

    # Cast x to bf16 at the DMA boundary: halves HBM read traffic for the dominant
    # input; the kernel used to downcast it before the only op touching it anyway.
    x_bf16 = x.astype(jnp.bfloat16)

    # Explicit scoped-VMEM limit so large bt compiles on v5e (16 MiB scoped default)
    # and stays well inside v7x's 64 MiB physical VMEM.
    vmem_bytes = (
        2 * bt * T * C * 2                        # double-buffered x tiles (bf16)
        + C * 3 * hs * 2                          # resident packed weights (bf16)
        + 2 * bt * T * hs * x.dtype.itemsize      # double-buffered output slabs
        + 6 * bt * T * T * 4                      # wei / e / p (+ headroom) in f32
    )
    vmem_limit = int(min(48 * 1024 * 1024, max(16 * 1024 * 1024, 1.5 * vmem_bytes)))

    flops = 2 * B * T * C * (3 * hs) + 2 * B * T * T * hs * 2
    transcendentals = B * T * T
    bytes_accessed = (x_bf16.size * x_bf16.dtype.itemsize
                      + wqkv.size * wqkv.dtype.itemsize
                      + B * T * hs * x.dtype.itemsize)

    out_flat = pl.pallas_call(
        _head_kernel,
        out_shape=jax.ShapeDtypeStruct((B, T * hs), x.dtype),
        grid_spec=pltpu.PrefetchScalarGridSpec(
            num_scalar_prefetch=0,
            grid=grid,
            in_specs=[
                pl.BlockSpec((bt, T, C), lambda b: (b, 0, 0)),
                pl.BlockSpec((C, 3 * hs), lambda b: (0, 0)),   # weights stay resident
            ],
            out_specs=pl.BlockSpec((bt, T * hs), lambda b: (b, 0)),
        ),
        compiler_params=pltpu.CompilerParams(
            dimension_semantics=("parallel",),
            vmem_limit_bytes=vmem_limit),
        cost_estimate=pl.CostEstimate(flops=flops,
                                      transcendentals=transcendentals,
                                      bytes_accessed=bytes_accessed),
    )(x_bf16, wqkv)
    return out_flat.reshape(B, T, hs)


def _reference(x, wq, wk, wv):
    """Pure-JAX (f32) reference matching the PyTorch `Head.forward` semantics."""
    B, T, C = x.shape
    scale = 1.0 / (C ** 0.5)
    q = x @ wq
    k = x @ wk
    v = x @ wv
    wei = jnp.einsum('btd,bsd->bts', q, k) * scale
    mask = jnp.tril(jnp.ones((T, T), dtype=bool))
    wei = jnp.where(mask[None, :, :], wei, -jnp.inf)
    wei = jax.nn.softmax(wei, axis=-1)
    return wei @ v


if __name__ == "__main__":
    key = jax.random.PRNGKey(0)
    B, T = 2, 8
    k_x, k_q, k_k, k_v = jax.random.split(key, 4)

    x = jax.random.normal(k_x, (B, T, N_EMBED), dtype=jnp.float32)
    # Deterministic synthetic parameters with Linear-compatible shapes, stored (in, out).
    wq = jax.random.normal(k_q, (N_EMBED, HEAD_SIZE), jnp.float32) * 0.1
    wk = jax.random.normal(k_k, (N_EMBED, HEAD_SIZE), jnp.float32) * 0.1
    wv = jax.random.normal(k_v, (N_EMBED, HEAD_SIZE), jnp.float32) * 0.1

    out = head_attention(x, wq, wk, wv)
    out = jax.block_until_ready(out)

    ref = _reference(x, wq, wk, wv)
    assert out.shape == (B, T, HEAD_SIZE)
    # bf16 MXU operands (f32 accumulation) vs. f32 reference -> loosened tolerance.
    assert jnp.allclose(out, ref, atol=5e-2, rtol=5e-2), "mismatch vs reference"

    print("KERNEL_OK")
</pallas_src>

<mosaic_0001>
module attributes {stable_mosaic.version = 11 : i64} {
  func.func @_head_kernel(%arg0: i32, %arg1: memref<2x8x32xbf16, #tpu.memory_space<vmem>>, %arg2: memref<32x24xbf16, #tpu.memory_space<vmem>>, %arg3: memref<2x64xf32, #tpu.memory_space<vmem>>) attributes {dimension_semantics = [#tpu.dimension_semantics<parallel>], iteration_bounds = array<i64: 1>, scalar_prefetch = 0 : i64, scratch_operands = 0 : i64, tpu.core_type = #tpu.core_type<tc>, window_params = [{transform_indices = @transform_0, window_bounds = array<i64: 2, 8, 32>}, {pipeline_mode = #tpu.pipeline_mode<synchronous>, transform_indices = @transform_1, window_bounds = array<i64: 32, 24>}, {transform_indices = @transform_2, window_bounds = array<i64: 2, 64>}]} {
    %c0 = arith.constant 0 : index
    %c0_0 = arith.constant 0 : index
    %c0_1 = arith.constant 0 : index
    %0 = vector.load %arg1[%c0, %c0_0, %c0_1] : memref<2x8x32xbf16, #tpu.memory_space<vmem>>, vector<2x8x32xbf16>
    %1 = vector.shape_cast %0 : vector<2x8x32xbf16> to vector<16x32xbf16>
    %c0_2 = arith.constant 0 : index
    %c0_3 = arith.constant 0 : index
    %2 = vector.load %arg2[%c0_2, %c0_3] : memref<32x24xbf16, #tpu.memory_space<vmem>>, vector<32x24xbf16>
    %cst = arith.constant dense<0.000000e+00> : vector<16x24xf32>
    %3 = tpu.matmul %1, %2, %cst {dimension_numbers = #tpu.dot_dimension_numbers<[1], [0], [0], [1], [0, 0, 1, 1], [], []>} : vector<16x32xbf16>, vector<32x24xbf16>, vector<16x24xf32> -> vector<16x24xf32>
    %4 = vector.shape_cast %3 : vector<16x24xf32> to vector<2x8x24xf32>
    %5 = vector.extract_strided_slice %4 {offsets = [0, 0, 0], sizes = [2, 8, 8], strides = [1, 1, 1]} : vector<2x8x24xf32> to vector<2x8x8xf32>
    %6 = vector.extract_strided_slice %4 {offsets = [0, 0, 8], sizes = [2, 8, 8], strides = [1, 1, 1]} : vector<2x8x24xf32> to vector<2x8x8xf32>
    %7 = vector.extract_strided_slice %4 {offsets = [0, 0, 16], sizes = [2, 8, 8], strides = [1, 1, 1]} : vector<2x8x24xf32> to vector<2x8x8xf32>
    %8 = arith.truncf %5 : vector<2x8x8xf32> to vector<2x8x8xbf16>
    %9 = arith.truncf %6 : vector<2x8x8xf32> to vector<2x8x8xbf16>
    "tpu.trace_start"() <{level = 10 : i32, message = "btd,bsd->bts"}> : () -> ()
    %cst_4 = arith.constant dense<0.000000e+00> : vector<2x8x8xf32>
    %10 = tpu.matmul %8, %9, %cst_4 {dimension_numbers = #tpu.dot_dimension_numbers<[2], [2], [1], [1], [0, 0, 0, 1, 1, 1], [0], [0]>} : vector<2x8x8xbf16>, vector<2x8x8xbf16>, vector<2x8x8xf32> -> vector<2x8x8xf32>
    "tpu.trace_stop"() : () -> ()
    %11 = tpu.iota {dimensions = array<i32: 0>} : vector<8x8xi32>
    %12 = tpu.iota {dimensions = array<i32: 1>} : vector<8x8xi32>
    %13 = arith.cmpi sle, %12, %11 : vector<8x8xi32>
    %14 = vector.shape_cast %13 : vector<8x8xi1> to vector<1x8x8xi1>
    %cst_5 = arith.constant 0xFF800000 : f32
    %15 = vector.shape_cast %14 : vector<1x8x8xi1> to vector<1x8x8xi1>
    %16 = vector.broadcast %15 : vector<1x8x8xi1> to vector<2x8x8xi1>
    %17 = vector.broadcast %cst_5 : f32 to vector<2x8x8xf32>
    %18 = arith.select %16, %10, %17 : vector<2x8x8xi1>, vector<2x8x8xf32>
    %cst_6 = arith.constant dense<0xFF800000> : vector<2x8xf32>
    %19 = vector.multi_reduction <maximumf>, %18, %cst_6 [2] : vector<2x8x8xf32> to vector<2x8xf32>
    %20 = vector.shape_cast %19 : vector<2x8xf32> to vector<2x8x1xf32>
    %21 = vector.broadcast %20 : vector<2x8x1xf32> to vector<2x8x8xf32>
    %22 = arith.subf %18, %21 : vector<2x8x8xf32>
    %23 = math.exp %22 : vector<2x8x8xf32>
    %cst_7 = arith.constant dense<0.000000e+00> : vector<2x8xf32>
    %24 = vector.multi_reduction <add>, %23, %cst_7 [2] : vector<2x8x8xf32> to vector<2x8xf32>
    %25 = vector.shape_cast %24 : vector<2x8xf32> to vector<2x8x1xf32>
    %26 = tpu.reciprocal %25 {approx = true} : vector<2x8x1xf32> -> vector<2x8x1xf32>
    %27 = vector.broadcast %26 : vector<2x8x1xf32> to vector<2x8x8xf32>
    %28 = arith.mulf %23, %27 : vector<2x8x8xf32>
    %29 = arith.truncf %28 : vector<2x8x8xf32> to vector<2x8x8xbf16>
    %30 = arith.truncf %7 : vector<2x8x8xf32> to vector<2x8x8xbf16>
    "tpu.trace_start"() <{level = 10 : i32, message = "bts,bsd->btd"}> : () -> ()
    %cst_8 = arith.constant dense<0.000000e+00> : vector<2x8x8xf32>
    %31 = tpu.matmul %29, %30, %cst_8 {dimension_numbers = #tpu.dot_dimension_numbers<[2], [1], [1], [2], [0, 0, 0, 1, 1, 2], [0], [0]>} : vector<2x8x8xbf16>, vector<2x8x8xbf16>, vector<2x8x8xf32> -> vector<2x8x8xf32>
    "tpu.trace_stop"() : () -> ()
    %32 = vector.shape_cast %31 : vector<2x8x8xf32> to vector<2x64xf32>
    %c0_9 = arith.constant 0 : index
    %c0_10 = arith.constant 0 : index
    %33 = vector.load %arg3[%c0_9, %c0_10] : memref<2x64xf32, #tpu.memory_space<vmem>>, vector<2x64xf32>
    tpu.vector_store %arg3[%c0_9, %c0_10], %32 {strides = array<i32>} : memref<2x64xf32, #tpu.memory_space<vmem>>, vector<2x64xf32>,
    return
  }
  func.func @transform_0(%arg0: i32) -> (i32, i32, i32) {
    %c0_i32 = arith.constant 0 : i32
    %c0_i32_0 = arith.constant 0 : i32
    %c0_i32_1 = arith.constant 0 : i32
    return %arg0, %c0_i32, %c0_i32_0 : i32, i32, i32
  }
  func.func @transform_1(%arg0: i32) -> (i32, i32) {
    %c0_i32 = arith.constant 0 : i32
    %c0_i32_0 = arith.constant 0 : i32
    %c0_i32_1 = arith.constant 0 : i32
    return %c0_i32, %c0_i32_0 : i32, i32
  }
  func.func @transform_2(%arg0: i32) -> (i32, i32) {
    %c0_i32 = arith.constant 0 : i32
    %c0_i32_0 = arith.constant 0 : i32
    return %arg0, %c0_i32 : i32, i32
  }
}

</mosaic_0001>

<llo_original>
// kernel: tpu_custom_call.1
$region0: #{tpu_custom_call.1}
  #allocation0 [shape = 'u32[]', space=smem, size = 0x4, offset = 0x4, fixed_abs, tag = 'smem constant byte address 0x4 - core index']
  #allocation1 [shape = 'u32[72,128]{1,0:T(1,128)}', space=vmem, size = 0x9000, scoped, tag = 'internal scratch']
  %s0 = inlined_call_operand.vmem [shape: bf16[2,8,32], index: 0, kind: input, shape index: {}]
  %s1 = inlined_call_operand.vmem [shape: bf16[32,24], index: 1, kind: input, shape index: {}]
  %s2 = inlined_call_operand.hbm [shape: f32[2,64], index: 2, kind: output, shape index: {}]
  %s3 = sld [smem:[#allocation0]]
  $region18: #{tpu_custom_call.1} parent=0
    _
  %s5 = ssub.s32 1, %s3
  %s6 = scalar_select 0, %s5, %s3
  $region1: #{tpu_custom_call.1} parent=0
    #allocation2 [shape = 'u8[1024]{0}', space=vmem, size = 0x400, scoped, tag = 'output window, operand 0, single buffered']
    #allocation3 [shape = 's32[1]{0}', space=sflag, size = 0x4, scoped, tag = 'scoped memory for tpu_custom_call.1']
    %7 = vsyncpa [#allocation3], 0
    // Predicated region
    $region2: #{tpu_custom_call.1} parent=1 // pred_check
      _
    $region3: #{tpu_custom_call.1} parent=1 // pred_check_branch
      %9 = sbr.rel (0) target = $region5
    $region4: #{tpu_custom_call.1} parent=1 // pred_region
      _
    $region5: #{tpu_custom_call.1} parent=1 // pred_fallthru
      _
    // Predicated region
    $region6: #{tpu_custom_call.1} parent=1 // pred_check
      _
    $region7: #{tpu_custom_call.1} parent=1 // pred_check_branch
      %11 = sbr.rel (0) target = $region9
    $region8: #{tpu_custom_call.1} parent=1 // pred_region
      _
    $region9: #{tpu_custom_call.1} parent=1 // pred_fallthru
      _
    %v13 = vld [vmem:[%s0] sm:$0xf]
    %v14 = vld [vmem:[%s0 + $0x4] sm:$0xf]
    %v15 = vld [vmem:[%s1] sm:$0xf]
    %v16 = vld [vmem:[%s1 + $0x4] sm:$0xf]
    %v17 = vld [vmem:[%s1 + $0x8] sm:$0xf]
    %v18 = vld [vmem:[%s1 + $0xc] sm:$0xf]
    %v21 = vunpack.c.l.b16 %v13
    %v22 = vunpack.c.l.b16 %v14
    %v23 = vpack.c.b16 %v22, %v21
    %v28 = vunpack.c.l.b16 %v15
    %v29 = vunpack.c.l.b16 %v16
    %v30 = vunpack.c.l.b16 %v17
    %v31 = vunpack.c.l.b16 %v18
    %v32 = vpack.c.b16 %v29, %v28
    %v33 = vpack.c.b16 %v31, %v30
    %vm36 = vcmask 261120
    %v38 = vsel %vm36, %v23, 0
    %40 = vmatpush.bf16.msra.mxu0 0
    %41 = vmatpush.bf16.msra.mxu0 0
    %42 = vmatpush.bf16.msra.mxu0 0
    %43 = vmatpush.bf16.msra.mxu0 0
    %44 = vmatpush.bf16.msra.mxu0 0
    %45 = vmatpush.bf16.msra.mxu0 0
    %46 = vmatpush.bf16.msra.mxu0 %v33
    %47 = vmatpush.bf16.msra.mxu0 %v32
    %48 = vmatmul.bf16.gmra.mxu0 %v38
    %v49 = vpop.f32.mrf.mxu0
    %v50 = vadd.f32 0.0, %v49
    %v51 = vpop.f32.mrf.mxu0
    %v52 = vadd.f32 0.0, %v51
    %53 = vdwg.mxu0
    %v54 = vpack.c.bf16 %v50, %v50
    %v55 = vpack.c.bf16 %v52, %v52
    %v57 = vunpack.c.l.b16 %v54
    %v58 = vpack.c.b16 %v57, %v57
    %59 = vrot.lane.b32.xlu0 %v58, 120
    %v60 = vpop.permute.xlu0 %59
    %vm61 = vcmask 64512
    %v63 = vsel %vm61, %v54, 0
    %v66 = vsel %vm61, %v60, 0
    %68 = vmatpush.bf16.xpose.msra.mxu0 0
    %69 = vmatpush.bf16.xpose.msra.mxu0 0
    %70 = vmatpush.bf16.xpose.msra.mxu0 0
    %71 = vmatpush.bf16.xpose.msra.mxu0 0
    %72 = vmatpush.bf16.xpose.msra.mxu0 0
    %73 = vmatpush.bf16.xpose.msra.mxu0 0
    %74 = vmatpush.bf16.xpose.msra.mxu0 0
    %75 = vmatpush.bf16.xpose.msra.mxu0 %v66
    %76 = vmatmul.bf16.gmra.mxu0 %v63
    %v77 = vpop.f32.mrf.mxu0
    %v78 = vadd.f32 0.0, %v77
    %v79 = vpop.f32.mrf.mxu0
    %80 = vdwg.mxu0
    %v82 = vunpack.c.l.b16 %v55
    %v83 = vpack.c.b16 %v82, %v82
    %84 = vrot.lane.b32.xlu0 %v83, 120
    %v85 = vpop.permute.xlu0 %84
    %v87 = vsel %vm61, %v55, 0
    %v90 = vsel %vm61, %v85, 0
    %92 = vmatpush.bf16.xpose.msra.mxu0 0
    %93 = vmatpush.bf16.xpose.msra.mxu0 0
    %94 = vmatpush.bf16.xpose.msra.mxu0 0
    %95 = vmatpush.bf16.xpose.msra.mxu0 0
    %96 = vmatpush.bf16.xpose.msra.mxu0 0
    %97 = vmatpush.bf16.xpose.msra.mxu0 0
    %98 = vmatpush.bf16.xpose.msra.mxu0 0
    %99 = vmatpush.bf16.xpose.msra.mxu0 %v90
    %100 = vmatmul.bf16.gmra.mxu0 %v87
    %v101 = vpop.f32.mrf.mxu0
    %v102 = vadd.f32 0.0, %v101
    %v103 = vpop.f32.mrf.mxu0
    %104 = vdwg.mxu0
    %v105 = vlaneseq
    %v106 = vshrl.u32 %v105, 7
    %v107 = vlaneseq
    %v108 = vand.u32 %v107, 127
    %vm109 = vcmp.le.s32.totalorder %v108, %v106
    %v110 = vsel %vm109, 1, 0
    %vm111 = vcmp.eq.s32.totalorder %v110, 1
    %v112 = vsel %vm111, %v78, -inf
    %v113 = vsel %vm111, %v102, -inf
    %v114 = vsel %vm61, %v112, -inf
    %115 = vmax.xlane.f32.xlu0 %v114
    %v116 = vpop.xlane.xlu0 %115
    %v117 = vsel %vm61, %v113, -inf
    %118 = vmax.xlane.f32.xlu0 %v117
    %v119 = vpop.xlane.xlu0 %118
    %v120 = vsub.f32 %v112, %v116
    %v121 = vsub.f32 %v113, %v119
    %v122 = vmul.f32 %v120, 1.442695
    %v123 = vpow.pop %v122
    %v124 = vmul.f32 %v121, 1.442695
    %v125 = vpow.pop %v124
    %v126 = vsel %vm61, %v123, 0.0
    %127 = vadd.xlane.f32.xlu0 %v126
    %v128 = vpop.xlane.xlu0 %127
    %v129 = vsel %vm61, %v125, 0.0
    %130 = vadd.xlane.f32.xlu0 %v129
    %v131 = vpop.xlane.xlu0 %130
    %v132 = vrcp.pop %v128
    %v133 = vrcp.pop %v131
    %v134 = vmul.f32 %v123, %v132
    %v135 = vmul.f32 %v125, %v133
    %v136 = vpack.c.bf16 %v134, %v134
    %v137 = vpack.c.bf16 %v135, %v135
    %138 = vrot.lane.b32.xlu0 %v58, 112
    %v139 = vpop.permute.xlu0 %138
    %v141 = vsel %vm61, %v136, 0
    %vm143 = vcmask 1043456
    %v145 = vsel %vm143, %v139, 0
    %147 = vmatpush.bf16.msra.mxu0 0
    %148 = vmatpush.bf16.msra.mxu0 0
    %149 = vmatpush.bf16.msra.mxu0 0
    %150 = vmatpush.bf16.msra.mxu0 0
    %151 = vmatpush.bf16.msra.mxu0 0
    %152 = vmatpush.bf16.msra.mxu0 0
    %153 = vmatpush.bf16.msra.mxu0 0
    %154 = vmatpush.bf16.msra.mxu0 %v145
    %155 = vmatmul.bf16.gmra.mxu0 %v141
    %v156 = vpop.f32.mrf.mxu0
    %v157 = vadd.f32 0.0, %v156
    %v158 = vpop.f32.mrf.mxu0
    %159 = vdwg.mxu0
    %160 = vrot.lane.b32.xlu0 %v83, 112
    %v161 = vpop.permute.xlu0 %160
    %v163 = vsel %vm61, %v137, 0
    %v166 = vsel %vm143, %v161, 0
    %168 = vmatpush.bf16.msra.mxu0 0
    %169 = vmatpush.bf16.msra.mxu0 0
    %170 = vmatpush.bf16.msra.mxu0 0
    %171 = vmatpush.bf16.msra.mxu0 0
    %172 = vmatpush.bf16.msra.mxu0 0
    %173 = vmatpush.bf16.msra.mxu0 0
    %174 = vmatpush.bf16.msra.mxu0 0
    %175 = vmatpush.bf16.msra.mxu0 %v166
    %176 = vmatmul.bf16.gmra.mxu0 %v163
    %v177 = vpop.f32.mrf.mxu0
    %v178 = vadd.f32 0.0, %v177
    %v179 = vpop.f32.mrf.mxu0
    %180 = vdwg.mxu0
    %v181 = vrot.slane %v157, 4
    %vm182 = vcmask 1047556
    %v183 = vsel %vm182, 0.0, %v181
    %v185 = vunpack.c.l.s4 1983009808
    %v186 = vunpack.c.0.s8 %v185
    %v187 = vperm.slane %v157, %v186
    %v189 = vunpack.c.l.s4 1983009808
    %v190 = vunpack.c.0.s8 %v189
    %v191 = vperm.slane %v183, %v190
    %v192 = vrot.slane %v178, 4
    %v193 = vsel %vm182, 0.0, %v192
    %v195 = vunpack.c.l.s4 1983009808
    %v196 = vunpack.c.0.s8 %v195
    %v197 = vperm.slane %v178, %v196
    %v199 = vunpack.c.l.s4 1983009808
    %v200 = vunpack.c.0.s8 %v199
    %v201 = vperm.slane %v193, %v200
    %v202 = vrot.slane %v197, 4
    %v203 = vsel %vm182, %v202, %v187
    %v204 = vrot.slane %v187, 4
    %v205 = vsel %vm182, %v197, %v204
    %v207 = vunpack.c.l.s4 1934713408
    %v208 = vunpack.c.0.s8 %v207
    %v209 = vperm.slane %v203, %v208
    %v211 = vunpack.c.l.s4 1934713408
    %v212 = vunpack.c.0.s8 %v211
    %v213 = vperm.slane %v205, %v212
    %v214 = vrot.slane %v201, 4
    %v215 = vsel %vm182, %v214, %v191
    %v216 = vrot.slane %v191, 4
    %v217 = vsel %vm182, %v201, %v216
    %v219 = vunpack.c.l.s4 1934713408
    %v220 = vunpack.c.0.s8 %v219
    %v221 = vperm.slane %v215, %v220
    %v223 = vunpack.c.l.s4 1934713408
    %v224 = vunpack.c.0.s8 %v223
    %v225 = vperm.slane %v217, %v224
    %v226 = vrot.slane %v209, 4
    %v227 = vsel %vm182, 0.0, %v226
    %v228 = vrot.slane %v213, 4
    %v229 = vsel %vm182, 0.0, %v228
    %v230 = vrot.slane %v221, 4
    %v231 = vsel %vm182, 0.0, %v230
    %v232 = vrot.slane %v225, 4
    %v233 = vsel %vm182, 0.0, %v232
    %235 = vrot.lane.b32.xlu0 %v227, 8
    %v236 = vpop.permute.xlu0 %235
    %239 = vrot.lane.b32.xlu0 %v213, 16
    %v240 = vpop.permute.xlu0 %239
    %243 = vrot.lane.b32.xlu0 %v229, 24
    %v244 = vpop.permute.xlu0 %243
    %247 = vrot.lane.b32.xlu0 %v221, 32
    %v248 = vpop.permute.xlu0 %247
    %251 = vrot.lane.b32.xlu0 %v231, 40
    %v252 = vpop.permute.xlu0 %251
    %255 = vrot.lane.b32.xlu0 %v225, 48
    %v256 = vpop.permute.xlu0 %255
    %259 = vrot.lane.b32.xlu0 %v233, 56
    %v260 = vpop.permute.xlu0 %259
    %v262 = vsel %vm61, %v209, %v236
    %vm263 = vcmask 130048
    %v264 = vsel %vm263, %v262, %v240
    %vm265 = vcmask 195584
    %v266 = vsel %vm265, %v264, %v244
    %v267 = vsel %vm36, %v266, %v248
    %vm268 = vcmask 326656
    %v269 = vsel %vm268, %v267, %v252
    %vm270 = vcmask 392192
    %v271 = vsel %vm270, %v269, %v256
    %vm272 = vcmask 457728
    %v273 = vsel %vm272, %v271, %v260
    %vm274 = vcmask 517120
    %275 = vst.msk [vmem:[#allocation2] sm:$0x3] %vm274, %v273
    // Predicated region
    $region10: #{tpu_custom_call.1} parent=1 // pred_check
      _
    $region11: #{tpu_custom_call.1} parent=1 // pred_check_branch
      %277 = sbr.rel (0) target = $region13
    $region12: #{tpu_custom_call.1} parent=1 // pred_region
      %279 = vsyncadd [#allocation3], 0
      %s281 = sshll.u32 [#allocation2], 4
      %s282 = int_to_ptr.vmem [resolvable:$true] %s281
      %s283 = sshll.u32 %s2, 4
      %s284 = int_to_ptr.hbm [resolvable:$true] %s283
      %286 = dma.vmem_to_hbm [thread:$0]  %s282, 32, %s284, [#allocation3]
    $region13: #{tpu_custom_call.1} parent=1 // pred_fallthru
      _
    // Predicated region
    $region14: #{tpu_custom_call.1} parent=1 // pred_check
      _
    $region15: #{tpu_custom_call.1} parent=1 // pred_check_branch
      %288 = sbr.rel (0) target = $region17
    $region16: #{tpu_custom_call.1} parent=1 // pred_region
      %290 = dma.done [#allocation3], 32
    $region17: #{tpu_custom_call.1} parent=1 // pred_fallthru
      _
    %291 = vsyncpa [#allocation3], 1

</llo_original>
